<compile_context>
chip_gen: v7x
topology: tpu7x:2x2x1
jax: 0.10.0
libtpu: 0.0.40
codegen_flags: <defaults>
</compile_context>

<pallas_src>
import functools

import jax
import jax.numpy as jnp
from jax.experimental import pallas as pl
from jax.experimental.pallas import tpu as pltpu

_ALIGN = 16                            # slab row alignment (f32 8-row & bf16 16-row tiles)
_VMEM_ROW_BUDGET = 16 * 1024 * 1024    # conservative per-row VMEM budget (v7x: 32 MiB scoped default)


def _round_up(x, m):
    return ((x + m - 1) // m) * m


def _cdiv(a, b):
    return -(-a // b)


def _slab_layout(state_size, hidden_layers, ap_size):
    """Static packing layout of the fused parameter slab.

    Returns (lane, layers, wo_off, wp_off, bc_off, total_rows); `layers` is a
    tuple of (w_off, w_rows_used, b_off) per hidden layer.  Every parameter
    block starts on a 16-row boundary.
    """
    lane = _round_up(max(tuple(hidden_layers) + (ap_size, 1)), 128)
    layers = []
    row = 0
    in_rows = state_size                      # contraction rows used by layer 0
    for _h in hidden_layers:
        w_off = row
        row += _round_up(in_rows, _ALIGN)     # weight block
        b_off = row
        row += _ALIGN                         # bias block (row 0 used)
        layers.append((w_off, in_rows, b_off))
        in_rows = lane                        # activations are lane-wide after layer 0
    wo_off = row
    row += lane                               # output-layer weights  [LANE, LANE]
    wp_off = row
    row += _round_up(state_size, _ALIGN)      # passthrough weights   [S, LANE]
    bc_off = row
    row += _ALIGN                             # fused bias (bo + bp), row 0 used
    return lane, tuple(layers), wo_off, wp_off, bc_off, row


def pack_params(params, state_size, hidden_layers, ap_size, dtype=jnp.float32):
    """One-time packing of [w1,b1,...,wo,bo,wp,bp] into one lane-aligned slab.

    dtype=jnp.bfloat16 is the fast path for v6e/v7x (bf16-native MXU, half the
    slab bytes); dtype=jnp.float32 is bit-accurate (v5e default).  The zero
    padding is a correctness invariant: padded rows/lanes must contribute 0.
    """
    lane, layers, wo_off, wp_off, bc_off, total = _slab_layout(
        state_size, hidden_layers, ap_size)
    slab = jnp.zeros((total, lane), dtype)

    idx = 0
    in_size = state_size
    for li, h in enumerate(hidden_layers):
        w, b = params[idx], params[idx + 1]
        idx += 2
        w_off, _w_rows, b_off = layers[li]
        slab = slab.at[w_off:w_off + in_size, :h].set(w.astype(dtype))
        slab = slab.at[b_off:b_off + 1, :h].set(b.reshape(1, h).astype(dtype))
        in_size = h

    wo, bo, wp, bp = params[idx], params[idx + 1], params[idx + 2], params[idx + 3]
    slab = slab.at[wo_off:wo_off + in_size, :ap_size].set(wo.astype(dtype))
    slab = slab.at[wp_off:wp_off + state_size, :ap_size].set(wp.astype(dtype))
    b_cat = (bo.reshape(1, -1).astype(jnp.float32)
             + bp.reshape(1, -1).astype(jnp.float32))        # fuse biases in f32
    slab = slab.at[bc_off:bc_off + 1, :ap_size].set(b_cat.astype(dtype))
    return slab


def param_actor_kernel(x_ref, slab_ref, out_ref, *, layers, wo_off, wp_off,
                       bc_off, lane, state_size, ap_size):
    mm_dtype = slab_ref.dtype                 # MXU operand dtype (f32 or bf16)

    # Raw-dtype input, cast in-register (no wrapper-side astype/pad passes).
    x_f32 = x_ref[...].astype(jnp.float32)               # [TB, S]
    x_mm = x_f32.astype(mm_dtype)

    # Hidden layers (static unroll): relu(h @ W + b).  Matmul operands in the
    # slab dtype, f32 accumulation, bias/relu in f32 on the VPU.
    h_mm = x_mm
    for (w_off, w_rows, b_off) in layers:
        w = slab_ref[w_off:w_off + w_rows, :]                      # [w_rows, LANE]
        b = slab_ref[b_off:b_off + 1, :].astype(jnp.float32)       # [1, LANE]
        h = jnp.maximum(
            jnp.dot(h_mm, w, preferred_element_type=jnp.float32) + b, 0.0)
        h_mm = h.astype(mm_dtype)

    # Fused output + frozen passthrough layer, contraction SPLIT into two
    # clean dots (no in-kernel concatenate -> no materialized [TB, LANE+S]
    # VMEM copy, no awkward K=LANE+S contraction).
    wo = slab_ref[wo_off:wo_off + lane, :]                         # [LANE, LANE]
    wp = slab_ref[wp_off:wp_off + state_size, :]                   # [S,    LANE]
    bc = slab_ref[bc_off:bc_off + 1, :].astype(jnp.float32)        # [1, LANE] = bo + bp
    ap = (jnp.dot(h_mm, wo, preferred_element_type=jnp.float32)
          + jnp.dot(x_mm, wp, preferred_element_type=jnp.float32)
          + bc)

    # sigmoid(x) == 0.5 * (tanh(x/2) + 1): a single EUP transcendental.
    sig = 0.5 * (jnp.tanh(0.5 * ap) + 1.0)

    # Narrow, exact store: only ap_size useful lanes go to HBM (no 16x-padded
    # output write + wrapper slice/re-read).
    out_ref[...] = sig[:, :ap_size].astype(out_ref.dtype)


def _pick_batch_tile(batch, state_size, lane, ap_size):
    """Batch-tile policy.

    Small batches: one full-batch block (overhead-dominated; splitting only
    adds ~0.35us/step).  Large batches: >=2 (up to 4+) 8-aligned grid steps,
    capped at 2048 rows and clamped against a conservative VMEM budget, so the
    pipeline overlaps DMA with compute and "parallel" can use both v7x TCs.
    """
    # bytes per batch row live in VMEM: 2x input buf + 2x output buf +
    # ~4 f32 [tb, lane] intermediates inside the kernel body.
    per_row = 2 * 4 * state_size + 2 * 4 * ap_size + 4 * 4 * lane
    cap = min(2048, max(8, (_VMEM_ROW_BUDGET // per_row) // 8 * 8))
    if batch <= min(512, cap):
        return batch                          # single step, block == full batch
    n_steps = max(4 if batch >= 2048 else 2, _cdiv(batch, cap))
    return min(cap, _round_up(_cdiv(batch, n_steps), 8))


@functools.partial(jax.jit, static_argnames=("state_size", "hidden_layers", "ap_size"))
def param_actor_forward(state, slab, *, state_size, hidden_layers, ap_size):
    lane, layers, wo_off, wp_off, bc_off, total = _slab_layout(
        state_size, hidden_layers, ap_size)
    assert slab.shape == (total, lane)
    assert state.shape[1] == state_size

    batch = state.shape[0]
    tb = _pick_batch_tile(batch, state_size, lane, ap_size)
    grid_b = _cdiv(batch, tb)
    padded_batch = grid_b * tb
    if padded_batch != batch:                 # ragged tail only (usually a no-op)
        state = jnp.pad(state, ((0, padded_batch - batch), (0, 0)))

    kernel = functools.partial(
        param_actor_kernel, layers=layers, wo_off=wo_off, wp_off=wp_off,
        bc_off=bc_off, lane=lane, state_size=state_size, ap_size=ap_size)

    out = pl.pallas_call(
        kernel,
        out_shape=jax.ShapeDtypeStruct((padded_batch, ap_size), jnp.float32),
        grid=(grid_b,),
        in_specs=[
            # state: tiled on batch, raw dtype, full (narrow) feature width.
            pl.BlockSpec((tb, state_size), lambda i: (i, 0)),
            # slab: constant index_map -> DMA'd once, resident across steps.
            # (Not forcing pipeline_mode=Buffered(1); the extra buffer is only
            #  ~slab-sized and the constant block index avoids re-DMA anyway.)
            pl.BlockSpec((total, lane), lambda i: (0, 0)),
        ],
        # Narrow lane-exact output: HBM write is exactly (batch, ap_size).
        out_specs=pl.BlockSpec((tb, ap_size), lambda i: (i, 0)),
        compiler_params=pltpu.CompilerParams(
            dimension_semantics=("parallel",),   # shard batch steps across TCs (v7x)
        ),
    )(state, slab)

    if padded_batch != batch:
        out = out[:batch]
    return out


def init_params(key, state_size, hidden_layers, action_parameter_size,
                output_layer_init_std=0.1):
    """Deterministic init mirroring ParamActor.__init__ (init_type='kaiming',
    activation='relu', zero biases, passthrough layer frozen at zero)."""
    keys = jax.random.split(key, len(hidden_layers) + 1)
    params = []
    in_size = state_size
    for i, h in enumerate(hidden_layers):
        std = (2.0 / in_size) ** 0.5          # kaiming_normal_, fan_in, relu
        w = std * jax.random.normal(keys[i], (in_size, h), dtype=jnp.float32)
        b = jnp.zeros((1, h), dtype=jnp.float32)
        params.extend([w, b])
        in_size = h

    wo = output_layer_init_std * jax.random.normal(
        keys[-1], (in_size, action_parameter_size), dtype=jnp.float32)
    bo = jnp.zeros((1, action_parameter_size), dtype=jnp.float32)
    wp = jnp.zeros((state_size, action_parameter_size), dtype=jnp.float32)
    bp = jnp.zeros((1, action_parameter_size), dtype=jnp.float32)
    return params + [wo, bo, wp, bp]


def reference_forward(state, params):
    n_hidden = (len(params) - 4) // 2
    h = state
    for i in range(n_hidden):
        h = jax.nn.relu(h @ params[2 * i] + params[2 * i + 1])
    wo, bo, wp, bp = params[-4:]
    ap = h @ wo + bo + state @ wp + bp
    return jax.nn.sigmoid(ap)


if __name__ == "__main__":
    B = 8
    state_size = 16
    hidden_layers = (32, 32)
    action_parameter_size = 8

    key = jax.random.PRNGKey(0)
    k_state, k_params = jax.random.split(key)

    state = jax.random.normal(k_state, (B, state_size), dtype=jnp.float32)
    params = init_params(k_params, state_size, hidden_layers,
                         action_parameter_size, output_layer_init_std=0.1)
    ref = reference_forward(state, params)

    # f32 slab: bit-accurate path (v5e default; correctness baseline).
    slab_f32 = pack_params(params, state_size, hidden_layers,
                           action_parameter_size, dtype=jnp.float32)
    out_f32 = jax.block_until_ready(param_actor_forward(
        state, slab_f32, state_size=state_size, hidden_layers=hidden_layers,
        ap_size=action_parameter_size))
    assert out_f32.shape == (B, action_parameter_size)
    assert jnp.allclose(out_f32, ref, atol=5e-5, rtol=5e-5)

    # bf16 slab: v6e/v7x MXU-native path (bf16 matmul operands, f32
    # accumulation + f32 elementwise); looser tolerance vs the f32 reference.
    slab_bf16 = pack_params(params, state_size, hidden_layers,
                            action_parameter_size, dtype=jnp.bfloat16)
    out_bf16 = jax.block_until_ready(param_actor_forward(
        state, slab_bf16, state_size=state_size, hidden_layers=hidden_layers,
        ap_size=action_parameter_size))
    assert out_bf16.shape == (B, action_parameter_size)
    assert jnp.allclose(out_bf16, ref, atol=3e-2, rtol=0)

    print("KERNEL_OK")
</pallas_src>

<mosaic_0001>
module attributes {stable_mosaic.version = 11 : i64} {
  func.func @param_actor_kernel(%arg0: i32, %arg1: memref<8x16xf32, #tpu.memory_space<vmem>>, %arg2: memref<336x128xf32, #tpu.memory_space<vmem>>, %arg3: memref<8x8xf32, #tpu.memory_space<vmem>>) attributes {dimension_semantics = [#tpu.dimension_semantics<parallel>], iteration_bounds = array<i64: 1>, scalar_prefetch = 0 : i64, scratch_operands = 0 : i64, tpu.core_type = #tpu.core_type<tc>, window_params = [{transform_indices = @transform_0, window_bounds = array<i64: 8, 16>}, {pipeline_mode = #tpu.pipeline_mode<synchronous>, transform_indices = @transform_1, window_bounds = array<i64: 336, 128>}, {transform_indices = @transform_2, window_bounds = array<i64: 8, 8>}]} {
    %c0 = arith.constant 0 : index
    %c0_0 = arith.constant 0 : index
    %0 = vector.load %arg1[%c0, %c0_0] : memref<8x16xf32, #tpu.memory_space<vmem>>, vector<8x16xf32>
    %c0_1 = arith.constant 0 : index
    %c0_2 = arith.constant 0 : index
    %1 = vector.load %arg2[%c0_1, %c0_2] : memref<336x128xf32, #tpu.memory_space<vmem>>, vector<16x128xf32>
    %c16 = arith.constant 16 : index
    %c0_3 = arith.constant 0 : index
    %2 = vector.load %arg2[%c16, %c0_3] : memref<336x128xf32, #tpu.memory_space<vmem>>, vector<1x128xf32>
    %cst = arith.constant dense<0.000000e+00> : vector<8x128xf32>
    %3 = tpu.matmul %0, %1, %cst {dimension_numbers = #tpu.dot_dimension_numbers<[1], [0], [0], [1], [0, 0, 1, 1], [], []>} : vector<8x16xf32>, vector<16x128xf32>, vector<8x128xf32> -> vector<8x128xf32>
    %4 = vector.broadcast %2 : vector<1x128xf32> to vector<8x128xf32>
    %5 = arith.addf %3, %4 : vector<8x128xf32>
    %cst_4 = arith.constant 0.000000e+00 : f32
    %6 = vector.broadcast %cst_4 : f32 to vector<8x128xf32>
    %7 = arith.maximumf %5, %6 : vector<8x128xf32>
    %c32 = arith.constant 32 : index
    %c0_5 = arith.constant 0 : index
    %8 = vector.load %arg2[%c32, %c0_5] : memref<336x128xf32, #tpu.memory_space<vmem>>, vector<128x128xf32>
    %c160 = arith.constant 160 : index
    %c0_6 = arith.constant 0 : index
    %9 = vector.load %arg2[%c160, %c0_6] : memref<336x128xf32, #tpu.memory_space<vmem>>, vector<1x128xf32>
    %cst_7 = arith.constant dense<0.000000e+00> : vector<8x128xf32>
    %10 = tpu.matmul %7, %8, %cst_7 {dimension_numbers = #tpu.dot_dimension_numbers<[1], [0], [0], [1], [0, 0, 1, 1], [], []>} : vector<8x128xf32>, vector<128x128xf32>, vector<8x128xf32> -> vector<8x128xf32>
    %11 = vector.broadcast %9 : vector<1x128xf32> to vector<8x128xf32>
    %12 = arith.addf %10, %11 : vector<8x128xf32>
    %cst_8 = arith.constant 0.000000e+00 : f32
    %13 = vector.broadcast %cst_8 : f32 to vector<8x128xf32>
    %14 = arith.maximumf %12, %13 : vector<8x128xf32>
    %c176 = arith.constant 176 : index
    %c0_9 = arith.constant 0 : index
    %15 = vector.load %arg2[%c176, %c0_9] : memref<336x128xf32, #tpu.memory_space<vmem>>, vector<128x128xf32>
    %c304 = arith.constant 304 : index
    %c0_10 = arith.constant 0 : index
    %16 = vector.load %arg2[%c304, %c0_10] : memref<336x128xf32, #tpu.memory_space<vmem>>, vector<16x128xf32>
    %c320 = arith.constant 320 : index
    %c0_11 = arith.constant 0 : index
    %17 = vector.load %arg2[%c320, %c0_11] : memref<336x128xf32, #tpu.memory_space<vmem>>, vector<1x128xf32>
    %cst_12 = arith.constant dense<0.000000e+00> : vector<8x128xf32>
    %18 = tpu.matmul %14, %15, %cst_12 {dimension_numbers = #tpu.dot_dimension_numbers<[1], [0], [0], [1], [0, 0, 1, 1], [], []>} : vector<8x128xf32>, vector<128x128xf32>, vector<8x128xf32> -> vector<8x128xf32>
    %cst_13 = arith.constant dense<0.000000e+00> : vector<8x128xf32>
    %19 = tpu.matmul %0, %16, %cst_13 {dimension_numbers = #tpu.dot_dimension_numbers<[1], [0], [0], [1], [0, 0, 1, 1], [], []>} : vector<8x16xf32>, vector<16x128xf32>, vector<8x128xf32> -> vector<8x128xf32>
    %20 = arith.addf %18, %19 : vector<8x128xf32>
    %21 = vector.broadcast %17 : vector<1x128xf32> to vector<8x128xf32>
    %22 = arith.addf %20, %21 : vector<8x128xf32>
    %cst_14 = arith.constant 5.000000e-01 : f32
    %23 = vector.broadcast %cst_14 : f32 to vector<8x128xf32>
    %24 = arith.mulf %23, %22 : vector<8x128xf32>
    %25 = math.tanh %24 : vector<8x128xf32>
    %cst_15 = arith.constant 1.000000e+00 : f32
    %26 = vector.broadcast %cst_15 : f32 to vector<8x128xf32>
    %27 = arith.addf %25, %26 : vector<8x128xf32>
    %cst_16 = arith.constant 5.000000e-01 : f32
    %28 = vector.broadcast %cst_16 : f32 to vector<8x128xf32>
    %29 = arith.mulf %28, %27 : vector<8x128xf32>
    %30 = vector.extract_strided_slice %29 {offsets = [0, 0], sizes = [8, 8], strides = [1, 1]} : vector<8x128xf32> to vector<8x8xf32>
    %c0_17 = arith.constant 0 : index
    %c0_18 = arith.constant 0 : index
    %31 = vector.load %arg3[%c0_17, %c0_18] : memref<8x8xf32, #tpu.memory_space<vmem>>, vector<8x8xf32>
    tpu.vector_store %arg3[%c0_17, %c0_18], %30 {strides = array<i32>} : memref<8x8xf32, #tpu.memory_space<vmem>>, vector<8x8xf32>,
    return
  }
  func.func @transform_0(%arg0: i32) -> (i32, i32) {
    %c0_i32 = arith.constant 0 : i32
    %c0_i32_0 = arith.constant 0 : i32
    return %arg0, %c0_i32 : i32, i32
  }
  func.func @transform_1(%arg0: i32) -> (i32, i32) {
    %c0_i32 = arith.constant 0 : i32
    %c0_i32_0 = arith.constant 0 : i32
    %c0_i32_1 = arith.constant 0 : i32
    return %c0_i32, %c0_i32_0 : i32, i32
  }
  func.func @transform_2(%arg0: i32) -> (i32, i32) {
    %c0_i32 = arith.constant 0 : i32
    %c0_i32_0 = arith.constant 0 : i32
    return %arg0, %c0_i32 : i32, i32
  }
}

</mosaic_0001>

<llo_original>
// kernel: param_actor_forward.1
$region0: #{param_actor_forward.1}
  #allocation0 [shape = 'u32[]', space=smem, size = 0x4, offset = 0x4, fixed_abs, tag = 'smem constant byte address 0x4 - core index']
  #allocation1 [shape = 'u32[144,128]{1,0:T(1,128)}', space=vmem, size = 0x12000, scoped, tag = 'internal scratch']
  %s0 = inlined_call_operand.hbm [shape: f32[8,16], index: 0, kind: input, shape index: {}]
  %s1 = inlined_call_operand.hbm [shape: f32[336,128], index: 1, kind: input, shape index: {}]
  %s2 = inlined_call_operand.hbm [shape: f32[8,8], index: 2, kind: output, shape index: {}]
  %s3 = sld [smem:[#allocation0]]
  $region26: #{param_actor_forward.1} parent=0
    _
  %s5 = ssub.s32 1, %s3
  %s6 = scalar_select 0, %s5, %s3
  $region1: #{param_actor_forward.1} parent=0
    #allocation2 [shape = 'u8[4096]{0}', space=vmem, size = 0x1000, scoped, tag = 'input window, operand 0, single buffered']
    #allocation3 [shape = 's32[1]{0}', space=sflag, size = 0x4, scoped, tag = 'scoped memory for param_actor_forward.1']
    #allocation4 [shape = 's32[1]{0}', space=sflag, size = 0x4, scoped, tag = 'scoped memory for param_actor_forward.1']
    #allocation5 [shape = 'u8[172032]{0}', space=vmem, size = 0x2a000, scoped, tag = 'input window, operand 1, single buffered']
    #allocation6 [shape = 's32[1]{0}', space=sflag, size = 0x4, scoped, tag = 'scoped memory for param_actor_forward.1']
    #allocation7 [shape = 'u8[4096]{0}', space=vmem, size = 0x1000, scoped, tag = 'output window, operand 0, single buffered']
    %7 = vsyncpa [#allocation3], 0
    %8 = vsyncpa [#allocation6], 0
    %9 = vsyncpa [#allocation4], 0
    // Predicated region
    $region2: #{param_actor_forward.1} parent=1 // pred_check
      _
    $region3: #{param_actor_forward.1} parent=1 // pred_check_branch
      %11 = sbr.rel (0) target = $region5
    $region4: #{param_actor_forward.1} parent=1 // pred_region
      %s13 = ssub.s32 128, 128
      %14 = vsyncadd [#allocation3], %s13
      %s16 = sshll.u32 [#allocation2], 4
      %s17 = int_to_ptr.vmem [resolvable:$true] %s16
      %19 = dma.hbm_to_vmem [thread:$0]  %s0, 128, %s17, [#allocation3]
    $region5: #{param_actor_forward.1} parent=1 // pred_fallthru
      _
    // Predicated region
    $region6: #{param_actor_forward.1} parent=1 // pred_check
      _
    $region7: #{param_actor_forward.1} parent=1 // pred_check_branch
      %21 = sbr.rel (0) target = $region9
    $region8: #{param_actor_forward.1} parent=1 // pred_region
      %s23 = ssub.s32 5376, 5376
      %24 = vsyncadd [#allocation6], %s23
      %s25 = sshll.u32 [#allocation5], 4
      %s26 = int_to_ptr.vmem [resolvable:$true] %s25
      %31 = dma.hbm_to_vmem [thread:$0]  %s1, 5376, %s26, [#allocation6], 128, 128, 8
    $region9: #{param_actor_forward.1} parent=1 // pred_fallthru
      _
    // Predicated region
    $region10: #{param_actor_forward.1} parent=1 // pred_check
      _
    $region11: #{param_actor_forward.1} parent=1 // pred_check_branch
      %33 = sbr.rel (0) target = $region13
    $region12: #{param_actor_forward.1} parent=1 // pred_region
      %34 = dma.done [#allocation3], 128
    $region13: #{param_actor_forward.1} parent=1 // pred_fallthru
      _
    // Predicated region
    $region14: #{param_actor_forward.1} parent=1 // pred_check
      _
    $region15: #{param_actor_forward.1} parent=1 // pred_check_branch
      %36 = sbr.rel (0) target = $region17
    $region16: #{param_actor_forward.1} parent=1 // pred_region
      %37 = dma.done [#allocation6], 5376
    $region17: #{param_actor_forward.1} parent=1 // pred_fallthru
      _
    %v38 = vld [vmem:[#allocation2] sm:$0xff]
    %v39 = vld [vmem:[#allocation5] sm:$0xff]
    %v40 = vld [vmem:[#allocation5 + $0x8] sm:$0xff]
    %v41 = vld [vmem:[#allocation5 + $0x10] sm:$0x1]
    %v42 = vlaneseq
    %v43 = vshrl.u32 %v42, 7
    %v44 = vsub.s32 0, %v43
    %v45 = vrot.slane %v41, %v44
    %vm46 = vcmask 130048
    %v48 = vsel %vm46, %v38, 0
    %50 = vmatprep.subr.mxu0 0.0
    %51 = vmatpush1.msra.mxu0 %v39
    %52 = vmatprep.subr.mxu0 0.0
    %53 = vmatpush1.msra.mxu0 %v40
    %54 = vmatprep.subr.mxu0 0.0
    %55 = vmatpush1.msra.mxu0 0.0
    %56 = vmatprep.subr.mxu0 0.0
    %57 = vmatpush1.msra.mxu0 0.0
    %58 = vmatprep.subr.mxu0 0.0
    %59 = vmatpush1.msra.mxu0 0.0
    %60 = vmatprep.subr.mxu0 0.0
    %61 = vmatpush1.msra.mxu0 0.0
    %62 = vmatprep.subr.mxu0 0.0
    %63 = vmatpush1.msra.mxu0 0.0
    %64 = vmatprep.subr.mxu0 0.0
    %65 = vmatpush1.msra.mxu0 0.0
    %66 = vmatprep.subr.mxu0 0.0
    %67 = vmatpush1.msra.mxu0 0.0
    %68 = vmatprep.subr.mxu0 0.0
    %69 = vmatpush1.msra.mxu0 0.0
    %70 = vmatprep.subr.mxu0 0.0
    %71 = vmatpush1.msra.mxu0 0.0
    %72 = vmatprep.subr.mxu0 0.0
    %73 = vmatpush1.msra.mxu0 0.0
    %74 = vmatprep.subr.mxu0 0.0
    %75 = vmatpush1.msra.mxu0 0.0
    %76 = vmatprep.subr.mxu0 0.0
    %77 = vmatpush1.msra.mxu0 0.0
    %78 = vmatprep.subr.mxu0 0.0
    %79 = vmatpush1.msra.mxu0 0.0
    %80 = vmatprep.subr.mxu0 0.0
    %81 = vmatpush1.msra.mxu0 0.0
    %82 = vmatprep.subr.mxu0 0.0
    %83 = vmatpush1.msra.mxu0 0.0
    %84 = vmatprep.subr.mxu0 0.0
    %85 = vmatpush1.msra.mxu0 0.0
    %86 = vmatprep.subr.mxu0 0.0
    %87 = vmatpush1.msra.mxu0 0.0
    %88 = vmatprep.subr.mxu0 0.0
    %89 = vmatpush1.msra.mxu0 0.0
    %90 = vmatprep.subr.mxu0 0.0
    %91 = vmatpush1.msra.mxu0 0.0
    %92 = vmatprep.subr.mxu0 0.0
    %93 = vmatpush1.msra.mxu0 0.0
    %94 = vmatprep.subr.mxu0 0.0
    %95 = vmatpush1.msra.mxu0 0.0
    %96 = vmatprep.subr.mxu0 0.0
    %97 = vmatpush1.msra.mxu0 0.0
    %98 = vmatprep.subr.mxu0 0.0
    %99 = vmatpush1.msra.mxu0 0.0
    %100 = vmatprep.subr.mxu0 0.0
    %101 = vmatpush1.msra.mxu0 0.0
    %102 = vmatprep.subr.mxu0 0.0
    %103 = vmatpush1.msra.mxu0 0.0
    %104 = vmatprep.subr.mxu0 0.0
    %105 = vmatpush1.msra.mxu0 0.0
    %106 = vmatprep.subr.mxu0 0.0
    %107 = vmatpush1.msra.mxu0 0.0
    %108 = vmatprep.subr.mxu0 0.0
    %109 = vmatpush1.msra.mxu0 0.0
    %110 = vmatprep.subr.mxu0 0.0
    %111 = vmatpush1.msra.mxu0 0.0
    %112 = vmatprep.subr.mxu0 0.0
    %113 = vmatpush1.msra.mxu0 0.0
    %114 = vmatprep.mubr.f32.mxu0 0.0
    %115 = vmatmul.mubr.f32.gmra.mrb[0].mxu0 %v48
    %v116 = vpop.f32.mrb[0].mxu0
    %v117 = vadd.f32 %v45, %v116
    %v118 = vpop.f32.mrb[0].mxu0
    %119 = vdwg.mxu0
    %v120 = vmax.f32 %v117, 0.0
    %v121 = vld [vmem:[#allocation5 + $0x20] sm:$0xff]
    %v122 = vld [vmem:[#allocation5 + $0x28] sm:$0xff]
    %v123 = vld [vmem:[#allocation5 + $0x30] sm:$0xff]
    %v124 = vld [vmem:[#allocation5 + $0x38] sm:$0xff]
    %v125 = vld [vmem:[#allocation5 + $0x40] sm:$0xff]
    %v126 = vld [vmem:[#allocation5 + $0x48] sm:$0xff]
    %v127 = vld [vmem:[#allocation5 + $0x50] sm:$0xff]
    %v128 = vld [vmem:[#allocation5 + $0x58] sm:$0xff]
    %v129 = vld [vmem:[#allocation5 + $0x60] sm:$0xff]
    %v130 = vld [vmem:[#allocation5 + $0x68] sm:$0xff]
    %v131 = vld [vmem:[#allocation5 + $0x70] sm:$0xff]
    %v132 = vld [vmem:[#allocation5 + $0x78] sm:$0xff]
    %v133 = vld [vmem:[#allocation5 + $0x80] sm:$0xff]
    %v134 = vld [vmem:[#allocation5 + $0x88] sm:$0xff]
    %v135 = vld [vmem:[#allocation5 + $0x90] sm:$0xff]
    %v136 = vld [vmem:[#allocation5 + $0x98] sm:$0xff]
    %v137 = vld [vmem:[#allocation5 + $0xa0] sm:$0x1]
    %v138 = vlaneseq
    %v139 = vshrl.u32 %v138, 7
    %v140 = vsub.s32 0, %v139
    %v141 = vrot.slane %v137, %v140
    %142 = vmatprep.subr.mxu0 0.0
    %143 = vmatpush1.msra.mxu0 %v121
    %144 = vmatprep.subr.mxu0 0.0
    %145 = vmatpush1.msra.mxu0 %v122
    %146 = vmatprep.subr.mxu0 0.0
    %147 = vmatpush1.msra.mxu0 %v123
    %148 = vmatprep.subr.mxu0 0.0
    %149 = vmatpush1.msra.mxu0 %v124
    %150 = vmatprep.subr.mxu0 0.0
    %151 = vmatpush1.msra.mxu0 %v125
    %152 = vmatprep.subr.mxu0 0.0
    %153 = vmatpush1.msra.mxu0 %v126
    %154 = vmatprep.subr.mxu0 0.0
    %155 = vmatpush1.msra.mxu0 %v127
    %156 = vmatprep.subr.mxu0 0.0
    %157 = vmatpush1.msra.mxu0 %v128
    %158 = vmatprep.subr.mxu0 0.0
    %159 = vmatpush1.msra.mxu0 %v129
    %160 = vmatprep.subr.mxu0 0.0
    %161 = vmatpush1.msra.mxu0 %v130
    %162 = vmatprep.subr.mxu0 0.0
    %163 = vmatpush1.msra.mxu0 %v131
    %164 = vmatprep.subr.mxu0 0.0
    %165 = vmatpush1.msra.mxu0 %v132
    %166 = vmatprep.subr.mxu0 0.0
    %167 = vmatpush1.msra.mxu0 %v133
    %168 = vmatprep.subr.mxu0 0.0
    %169 = vmatpush1.msra.mxu0 %v134
    %170 = vmatprep.subr.mxu0 0.0
    %171 = vmatpush1.msra.mxu0 %v135
    %172 = vmatprep.subr.mxu0 0.0
    %173 = vmatpush1.msra.mxu0 %v136
    %174 = vmatprep.subr.mxu0 0.0
    %175 = vmatpush1.msra.mxu0 0.0
    %176 = vmatprep.subr.mxu0 0.0
    %177 = vmatpush1.msra.mxu0 0.0
    %178 = vmatprep.subr.mxu0 0.0
    %179 = vmatpush1.msra.mxu0 0.0
    %180 = vmatprep.subr.mxu0 0.0
    %181 = vmatpush1.msra.mxu0 0.0
    %182 = vmatprep.subr.mxu0 0.0
    %183 = vmatpush1.msra.mxu0 0.0
    %184 = vmatprep.subr.mxu0 0.0
    %185 = vmatpush1.msra.mxu0 0.0
    %186 = vmatprep.subr.mxu0 0.0
    %187 = vmatpush1.msra.mxu0 0.0
    %188 = vmatprep.subr.mxu0 0.0
    %189 = vmatpush1.msra.mxu0 0.0
    %190 = vmatprep.subr.mxu0 0.0
    %191 = vmatpush1.msra.mxu0 0.0
    %192 = vmatprep.subr.mxu0 0.0
    %193 = vmatpush1.msra.mxu0 0.0
    %194 = vmatprep.subr.mxu0 0.0
    %195 = vmatpush1.msra.mxu0 0.0
    %196 = vmatprep.subr.mxu0 0.0
    %197 = vmatpush1.msra.mxu0 0.0
    %198 = vmatprep.subr.mxu0 0.0
    %199 = vmatpush1.msra.mxu0 0.0
    %200 = vmatprep.subr.mxu0 0.0
    %201 = vmatpush1.msra.mxu0 0.0
    %202 = vmatprep.subr.mxu0 0.0
    %203 = vmatpush1.msra.mxu0 0.0
    %204 = vmatprep.subr.mxu0 0.0
    %205 = vmatpush1.msra.mxu0 0.0
    %206 = vmatprep.mubr.f32.mxu0 0.0
    %207 = vmatmul.mubr.f32.gmra.mrb[0].mxu0 %v120
    %v208 = vpop.f32.mrb[0].mxu0
    %v209 = vadd.f32 %v141, %v208
    %v210 = vpop.f32.mrb[0].mxu0
    %211 = vdwg.mxu0
    %v212 = vmax.f32 %v209, 0.0
    %v213 = vld [vmem:[#allocation5 + $0xb0] sm:$0xff]
    %v214 = vld [vmem:[#allocation5 + $0xb8] sm:$0xff]
    %v215 = vld [vmem:[#allocation5 + $0xc0] sm:$0xff]
    %v216 = vld [vmem:[#allocation5 + $0xc8] sm:$0xff]
    %v217 = vld [vmem:[#allocation5 + $0xd0] sm:$0xff]
    %v218 = vld [vmem:[#allocation5 + $0xd8] sm:$0xff]
    %v219 = vld [vmem:[#allocation5 + $0xe0] sm:$0xff]
    %v220 = vld [vmem:[#allocation5 + $0xe8] sm:$0xff]
    %v221 = vld [vmem:[#allocation5 + $0xf0] sm:$0xff]
    %v222 = vld [vmem:[#allocation5 + $0xf8] sm:$0xff]
    %v223 = vld [vmem:[#allocation5 + $0x100] sm:$0xff]
    %v224 = vld [vmem:[#allocation5 + $0x108] sm:$0xff]
    %v225 = vld [vmem:[#allocation5 + $0x110] sm:$0xff]
    %v226 = vld [vmem:[#allocation5 + $0x118] sm:$0xff]
    %v227 = vld [vmem:[#allocation5 + $0x120] sm:$0xff]
    %v228 = vld [vmem:[#allocation5 + $0x128] sm:$0xff]
    %v229 = vld [vmem:[#allocation5 + $0x130] sm:$0xff]
    %v230 = vld [vmem:[#allocation5 + $0x138] sm:$0xff]
    %v231 = vld [vmem:[#allocation5 + $0x140] sm:$0x1]
    %232 = vmatprep.subr.mxu0 0.0
    %233 = vmatpush1.msra.mxu0 %v229
    %234 = vmatprep.subr.mxu0 0.0
    %235 = vmatpush1.msra.mxu0 %v230
    %236 = vmatprep.subr.mxu0 0.0
    %237 = vmatpush1.msra.mxu0 0.0
    %238 = vmatprep.subr.mxu0 0.0
    %239 = vmatpush1.msra.mxu0 0.0
    %240 = vmatprep.subr.mxu0 0.0
    %241 = vmatpush1.msra.mxu0 0.0
    %242 = vmatprep.subr.mxu0 0.0
    %243 = vmatpush1.msra.mxu0 0.0
    %244 = vmatprep.subr.mxu0 0.0
    %245 = vmatpush1.msra.mxu0 0.0
    %246 = vmatprep.subr.mxu0 0.0
    %247 = vmatpush1.msra.mxu0 0.0
    %248 = vmatprep.subr.mxu0 0.0
    %249 = vmatpush1.msra.mxu0 0.0
    %250 = vmatprep.subr.mxu0 0.0
    %251 = vmatpush1.msra.mxu0 0.0
    %252 = vmatprep.subr.mxu0 0.0
    %253 = vmatpush1.msra.mxu0 0.0
    %254 = vmatprep.subr.mxu0 0.0
    %255 = vmatpush1.msra.mxu0 0.0
    %256 = vmatprep.subr.mxu0 0.0
    %257 = vmatpush1.msra.mxu0 0.0
    %258 = vmatprep.subr.mxu0 0.0
    %259 = vmatpush1.msra.mxu0 0.0
    %260 = vmatprep.subr.mxu0 0.0
    %261 = vmatpush1.msra.mxu0 0.0
    %262 = vmatprep.subr.mxu0 0.0
    %263 = vmatpush1.msra.mxu0 0.0
    %264 = vmatprep.subr.mxu0 0.0
    %265 = vmatpush1.msra.mxu0 0.0
    %266 = vmatprep.subr.mxu0 0.0
    %267 = vmatpush1.msra.mxu0 0.0
    %268 = vmatprep.subr.mxu0 0.0
    %269 = vmatpush1.msra.mxu0 0.0
    %270 = vmatprep.subr.mxu0 0.0
    %271 = vmatpush1.msra.mxu0 0.0
    %272 = vmatprep.subr.mxu0 0.0
    %273 = vmatpush1.msra.mxu0 0.0
    %274 = vmatprep.subr.mxu0 0.0
    %275 = vmatpush1.msra.mxu0 0.0
    %276 = vmatprep.subr.mxu0 0.0
    %277 = vmatpush1.msra.mxu0 0.0
    %278 = vmatprep.subr.mxu0 0.0
    %279 = vmatpush1.msra.mxu0 0.0
    %280 = vmatprep.subr.mxu0 0.0
    %281 = vmatpush1.msra.mxu0 0.0
    %282 = vmatprep.subr.mxu0 0.0
    %283 = vmatpush1.msra.mxu0 0.0
    %284 = vmatprep.subr.mxu0 0.0
    %285 = vmatpush1.msra.mxu0 0.0
    %286 = vmatprep.subr.mxu0 0.0
    %287 = vmatpush1.msra.mxu0 0.0
    %288 = vmatprep.subr.mxu0 0.0
    %289 = vmatpush1.msra.mxu0 0.0
    %290 = vmatprep.subr.mxu0 0.0
    %291 = vmatpush1.msra.mxu0 0.0
    %292 = vmatprep.subr.mxu0 0.0
    %293 = vmatpush1.msra.mxu0 0.0
    %294 = vmatprep.subr.mxu0 0.0
    %295 = vmatpush1.msra.mxu0 0.0
    %296 = vmatprep.mubr.f32.mxu0 0.0
    %297 = vmatmul.mubr.f32.gmra.mrb[0].mxu0 %v48
    %v298 = vpop.f32.mrb[0].mxu0
    %v299 = vadd.f32 0.0, %v298
    %v300 = vpop.f32.mrb[0].mxu0
    %301 = vdwg.mxu0
    %302 = vmatprep.subr.mxu0 0.0
    %303 = vmatpush1.msra.mxu0 %v213
    %304 = vmatprep.subr.mxu0 0.0
    %305 = vmatpush1.msra.mxu0 %v214
    %306 = vmatprep.subr.mxu0 0.0
    %307 = vmatpush1.msra.mxu0 %v215
    %308 = vmatprep.subr.mxu0 0.0
    %309 = vmatpush1.msra.mxu0 %v216
    %310 = vmatprep.subr.mxu0 0.0
    %311 = vmatpush1.msra.mxu0 %v217
    %312 = vmatprep.subr.mxu0 0.0
    %313 = vmatpush1.msra.mxu0 %v218
    %314 = vmatprep.subr.mxu0 0.0
    %315 = vmatpush1.msra.mxu0 %v219
    %316 = vmatprep.subr.mxu0 0.0
    %317 = vmatpush1.msra.mxu0 %v220
    %318 = vmatprep.subr.mxu0 0.0
    %319 = vmatpush1.msra.mxu0 %v221
    %320 = vmatprep.subr.mxu0 0.0
    %321 = vmatpush1.msra.mxu0 %v222
    %322 = vmatprep.subr.mxu0 0.0
    %323 = vmatpush1.msra.mxu0 %v223
    %324 = vmatprep.subr.mxu0 0.0
    %325 = vmatpush1.msra.mxu0 %v224
    %326 = vmatprep.subr.mxu0 0.0
    %327 = vmatpush1.msra.mxu0 %v225
    %328 = vmatprep.subr.mxu0 0.0
    %329 = vmatpush1.msra.mxu0 %v226
    %330 = vmatprep.subr.mxu0 0.0
    %331 = vmatpush1.msra.mxu0 %v227
    %332 = vmatprep.subr.mxu0 0.0
    %333 = vmatpush1.msra.mxu0 %v228
    %334 = vmatprep.subr.mxu0 0.0
    %335 = vmatpush1.msra.mxu0 0.0
    %336 = vmatprep.subr.mxu0 0.0
    %337 = vmatpush1.msra.mxu0 0.0
    %338 = vmatprep.subr.mxu0 0.0
    %339 = vmatpush1.msra.mxu0 0.0
    %340 = vmatprep.subr.mxu0 0.0
    %341 = vmatpush1.msra.mxu0 0.0
    %342 = vmatprep.subr.mxu0 0.0
    %343 = vmatpush1.msra.mxu0 0.0
    %344 = vmatprep.subr.mxu0 0.0
    %345 = vmatpush1.msra.mxu0 0.0
    %346 = vmatprep.subr.mxu0 0.0
    %347 = vmatpush1.msra.mxu0 0.0
    %348 = vmatprep.subr.mxu0 0.0
    %349 = vmatpush1.msra.mxu0 0.0
    %350 = vmatprep.subr.mxu0 0.0
    %351 = vmatpush1.msra.mxu0 0.0
    %352 = vmatprep.subr.mxu0 0.0
    %353 = vmatpush1.msra.mxu0 0.0
    %354 = vmatprep.subr.mxu0 0.0
    %355 = vmatpush1.msra.mxu0 0.0
    %356 = vmatprep.subr.mxu0 0.0
    %357 = vmatpush1.msra.mxu0 0.0
    %358 = vmatprep.subr.mxu0 0.0
    %359 = vmatpush1.msra.mxu0 0.0
    %360 = vmatprep.subr.mxu0 0.0
    %361 = vmatpush1.msra.mxu0 0.0
    %362 = vmatprep.subr.mxu0 0.0
    %363 = vmatpush1.msra.mxu0 0.0
    %364 = vmatprep.subr.mxu0 0.0
    %365 = vmatpush1.msra.mxu0 0.0
    %366 = vmatprep.mubr.f32.mxu0 0.0
    %367 = vmatmul.mubr.f32.gmra.mrb[0].mxu0 %v212
    %v368 = vpop.f32.mrb[0].mxu0
    %v369 = vadd.f32 %v299, %v368
    %v370 = vpop.f32.mrb[0].mxu0
    %371 = vdwg.mxu0
    %v372 = vlaneseq
    %v373 = vshrl.u32 %v372, 7
    %v374 = vsub.s32 0, %v373
    %v375 = vrot.slane %v231, %v374
    %v376 = vadd.f32 %v369, %v375
    %v377 = vmul.f32 %v376, 0.5
    %v378 = vtanh.pop %v377
    %v379 = vadd.f32 %v378, 1.0
    %v380 = vmul.f32 %v379, 0.5
    %vm381 = vcmask 64512
    %382 = vst.msk [vmem:[#allocation7] sm:$0xff] %vm381, %v380
    // Predicated region
    $region18: #{param_actor_forward.1} parent=1 // pred_check
      _
    $region19: #{param_actor_forward.1} parent=1 // pred_check_branch
      %384 = sbr.rel (0) target = $region21
    $region20: #{param_actor_forward.1} parent=1 // pred_region
      %s386 = ssub.s32 128, 128
      %387 = vsyncadd [#allocation4], %s386
      %s389 = sshll.u32 [#allocation7], 4
      %s390 = int_to_ptr.vmem [resolvable:$true] %s389
      %392 = dma.vmem_to_hbm [thread:$0]  %s390, 128, %s2, [#allocation4]
    $region21: #{param_actor_forward.1} parent=1 // pred_fallthru
      _
    // Predicated region
    $region22: #{param_actor_forward.1} parent=1 // pred_check
      _
    $region23: #{param_actor_forward.1} parent=1 // pred_check_branch
      %394 = sbr.rel (0) target = $region25
    $region24: #{param_actor_forward.1} parent=1 // pred_region
      %395 = dma.done [#allocation4], 128
    $region25: #{param_actor_forward.1} parent=1 // pred_fallthru
      _
    %396 = vsyncpa [#allocation3], 1
    %397 = vsyncpa [#allocation6], 1
    %398 = vsyncpa [#allocation4], 1

</llo_original>
